<compile_context>
chip_gen: v7x
topology: tpu7x:2x2x1
jax: 0.10.0
libtpu: 0.0.40
codegen_flags: <defaults>
</compile_context>

<pallas_src>
import functools
import math

import jax
import jax.numpy as jnp
from jax import lax
from jax.experimental import pallas as pl
from jax.experimental.pallas import tpu as pltpu


def _round_up(x, m):
    return (x + m - 1) // m * m


def _block_vmem_bytes(shape, dtype):
    """VMEM footprint of one block, including (sublane, lane) tile padding."""
    itemsize = jnp.dtype(dtype).itemsize
    sublane = max(8, 32 // itemsize)            # 8 for f32, 16 for bf16
    if len(shape) == 1:
        return _round_up(int(shape[0]) * itemsize, 512)
    lead = 1
    for s in shape[:-2]:
        lead *= int(s)
    r, c = int(shape[-2]), int(shape[-1])
    return lead * _round_up(r, sublane) * _round_up(c, 128) * itemsize


def _physical_vmem_bytes():
    try:
        return int(pltpu.get_tpu_info().vmem_capacity_bytes)
    except Exception:
        return 64 * 1024 * 1024                 # conservative (v7x per-core VMEM)


# ----------------------------------------------------------------------------
# Pallas kernel: per grid step (n, d_out, kd-tap) build one im2col slab
# (Ho*Wo, kh*kw*Cin) in VMEM and issue ONE MXU matmul (bf16 -> f32 acc);
# fused BN shift + exact GELU epilogue on the last depth tap.
# ----------------------------------------------------------------------------
def _conv3d_bn_gelu_kernel(x_ref, w_ref, shift_ref, o_ref, slab_ref, acc_ref, *,
                           kh, kw, cin, Ho, Wo, stride, dilation):
    # x_ref:     (1, Hp, Wp, Cin)          padded input D-plane for depth tap i
    # w_ref:     (kd, kh*kw*Cin, Coutp)    BN-scale-folded weight, VMEM-resident
    # shift_ref: (1, Coutp)                BN shift (f32)
    # o_ref:     (1, Ho*Wo, Coutp)         output plane
    # slab_ref:  (Ho*Wo, kh*kw*Cin)        im2col slab scratch (compute dtype)
    # acc_ref:   (Ho*Wo, Coutp)            f32 accumulator, persists across kd
    i = pl.program_id(2)                       # depth-tap index ('arbitrary' axis)

    @pl.when(i == 0)
    def _init():
        acc_ref[...] = jnp.zeros_like(acc_ref)

    x_plane = x_ref[0]                         # (Hp, Wp, Cin)

    if kh == 1 and kw == 1:
        # Single spatial tap: no slab packing needed.
        slab = x_plane[0:(Ho - 1) * stride + 1:stride,
                       0:(Wo - 1) * stride + 1:stride, :].reshape(Ho * Wo, cin)
    else:
        # Build the im2col slab ONCE into VMEM: columns ordered (kh, kw, Cin),
        # matching the weight's K ordering.
        for j in range(kh):                    # static, fully unrolled
            h0 = j * dilation
            for l in range(kw):
                w0 = l * dilation
                win = x_plane[h0:h0 + (Ho - 1) * stride + 1:stride,
                              w0:w0 + (Wo - 1) * stride + 1:stride, :]
                t = j * kw + l
                slab_ref[:, t * cin:(t + 1) * cin] = win.reshape(Ho * Wo, cin)
        slab = slab_ref[...]

    # One MXU matmul per grid step with K = kh*kw*Cin; depth-tap weight slice
    # hoisted out of any loop (single dynamic index per step).
    acc_ref[...] += jnp.dot(slab, w_ref[i], preferred_element_type=jnp.float32)

    @pl.when(i == pl.num_programs(2) - 1)
    def _epilogue():
        y = acc_ref[...] + shift_ref[...]       # BN shift (scale already folded)
        # Exact GELU (erf form) — matches nn.GELU(approximate='none').
        g = 0.5 * y * (1.0 + lax.erf(y * (1.0 / math.sqrt(2.0))))
        o_ref[0] = g.astype(o_ref.dtype)


# ----------------------------------------------------------------------------
# BasicConv3d forward.
# ----------------------------------------------------------------------------
@functools.partial(
    jax.jit,
    static_argnames=("stride", "padding", "dilation", "eps", "compute_dtype",
                     "channels_last_output"))
def basic_conv3d(x, weight, gamma, beta, running_mean, running_var, *,
                 stride=1, padding=0, dilation=1, eps=1e-5,
                 compute_dtype=jnp.bfloat16, channels_last_output=False):
    # x:      [N, Cin, D, H, W]   (NCDHW, matches PyTorch)
    # weight: [Cout, Cin, kd, kh, kw]
    N, Cin, D, H, W = x.shape
    Cout, Cin_w, kd, kh, kw = weight.shape
    assert Cin_w == Cin, "groups != 1 not supported"   # TODO(synk): grouped conv

    Do = (D + 2 * padding - dilation * (kd - 1) - 1) // stride + 1
    Ho = (H + 2 * padding - dilation * (kh - 1) - 1) // stride + 1
    Wo = (W + 2 * padding - dilation * (kw - 1) - 1) // stride + 1
    HoWo = Ho * Wo
    khw_cin = kh * kw * Cin
    Coutp = _round_up(Cout, 128)               # lane-dense output / full MXU columns
    out_dtype = x.dtype

    # Fold BatchNorm (inference) into the conv: per-Cout scale goes into the
    # weight, the remaining shift is applied in the kernel epilogue.
    inv_std = lax.rsqrt(running_var.astype(jnp.float32) + eps)
    scale = gamma.astype(jnp.float32) * inv_std                       # (Cout,)
    shift = beta.astype(jnp.float32) - running_mean.astype(jnp.float32) * scale

    # weight [Cout,Cin,kd,kh,kw] -> (kd, kh*kw*Cin, Coutp); K ordered (kh,kw,Cin)
    # to match the slab built in the kernel; Cout zero-padded to Coutp.
    w = weight.astype(jnp.float32).transpose(2, 3, 4, 1, 0) * scale   # (kd,kh,kw,Cin,Cout)
    w = jnp.pad(w, ((0, 0),) * 4 + ((0, Coutp - Cout),))
    w = w.reshape(kd, khw_cin, Coutp).astype(compute_dtype)

    shift_p = jnp.pad(shift, (0, Coutp - Cout)).reshape(1, Coutp)

    # Input: cast first (halves HBM bytes moved by the transpose/pad), then
    # NCDHW -> NDHWC, zero-pad spatial dims, flatten (N, Dp).
    p = padding
    xt = x.astype(compute_dtype).transpose(0, 2, 3, 4, 1)
    xp = jnp.pad(xt, ((0, 0), (p, p), (p, p), (p, p), (0, 0)))
    Dp, Hp, Wp = D + 2 * p, H + 2 * p, W + 2 * p
    xp = xp.reshape(N * Dp, Hp, Wp, Cin)

    # VMEM budget with tile padding accounted for (small Cin lane-pads to 128).
    cdt = compute_dtype
    vmem_est = (2 * _block_vmem_bytes((1, Hp, Wp, Cin), cdt)        # input block (dbl-buffered)
                + 2 * _block_vmem_bytes((kd, khw_cin, Coutp), cdt)  # resident folded weight
                + 2 * _block_vmem_bytes((1, Coutp), jnp.float32)    # shift
                + 2 * _block_vmem_bytes((1, HoWo, Coutp), out_dtype)  # output block
                + _block_vmem_bytes((HoWo, khw_cin), cdt)           # im2col slab scratch
                + _block_vmem_bytes((HoWo, Coutp), jnp.float32)     # f32 accumulator
                + 2 * _block_vmem_bytes((Ho, Wo, Cin), cdt))        # transient window values
    phys = _physical_vmem_bytes()
    # ~56 MiB cap on v7x (64 MiB physical), ~100 MiB on v5e/v6e (128 MiB).
    cap = max(32 << 20, min(phys - (8 << 20), 100 << 20))
    vmem_limit = int(min(max(vmem_est + (4 << 20), 32 << 20), cap))

    kernel = functools.partial(_conv3d_bn_gelu_kernel, kh=kh, kw=kw, cin=Cin,
                               Ho=Ho, Wo=Wo, stride=stride, dilation=dilation)

    out = pl.pallas_call(
        kernel,
        out_shape=jax.ShapeDtypeStruct((N * Do, HoWo, Coutp), out_dtype),
        grid_spec=pltpu.PrefetchScalarGridSpec(
            num_scalar_prefetch=0,
            grid=(N, Do, kd),                              # kd innermost: reduction
            in_specs=[
                # Shifted, padded D-plane for batch n, output depth do, tap i.
                pl.BlockSpec(
                    (1, Hp, Wp, Cin),
                    lambda n, do, i: (n * Dp + do * stride + i * dilation, 0, 0, 0)),
                # Full folded weight: constant index -> fetched once, resident;
                # depth tap selected inside the kernel via w_ref[i].
                pl.BlockSpec((kd, khw_cin, Coutp), lambda n, do, i: (0, 0, 0)),
                # BN shift.
                pl.BlockSpec((1, Coutp), lambda n, do, i: (0, 0)),
            ],
            out_specs=pl.BlockSpec((1, HoWo, Coutp),
                                   lambda n, do, i: (n * Do + do, 0, 0)),
            scratch_shapes=[
                pltpu.VMEM((HoWo, khw_cin), compute_dtype),   # im2col slab
                pltpu.VMEM((HoWo, Coutp), jnp.float32),       # accumulator
            ],
        ),
        compiler_params=pltpu.CompilerParams(
            dimension_semantics=("parallel", "parallel", "arbitrary"),
            vmem_limit_bytes=vmem_limit),
    )(xp, w, shift_p)

    out = out[..., :Cout].reshape(N, Do, Ho, Wo, Cout)
    if channels_last_output:
        return out                              # NDHWC (no extra HBM pass)
    return out.transpose(0, 4, 1, 2, 3)         # NCDHW, matching PyTorch


# ----------------------------------------------------------------------------
# Pure-JAX references for validation.
# ----------------------------------------------------------------------------
def _reference(x, weight, gamma, beta, running_mean, running_var, *,
               stride=1, padding=0, dilation=1, eps=1e-5,
               quantize_like_kernel=False):
    scale = gamma / jnp.sqrt(running_var + eps)
    shift = beta - running_mean * scale
    w = weight * scale[:, None, None, None, None]     # fold scale, like the kernel
    if quantize_like_kernel:                          # mirror the bf16 operand cast
        x = x.astype(jnp.bfloat16).astype(jnp.float32)
        w = w.astype(jnp.bfloat16).astype(jnp.float32)
    y = lax.conv_general_dilated(
        x, w,
        window_strides=(stride,) * 3,
        padding=[(padding, padding)] * 3,
        rhs_dilation=(dilation,) * 3,
        dimension_numbers=("NCDHW", "OIDHW", "NCDHW"),
        precision=lax.Precision.HIGHEST)
    y = y + shift[None, :, None, None, None]
    return 0.5 * y * (1.0 + lax.erf(y / math.sqrt(2.0)))


def _run_case(key, *, N, Cin, Cout, D, H, W, k, stride, padding, dilation):
    k_x, k_w, k_g, k_b, k_m, k_v = jax.random.split(key, 6)
    x = jax.random.normal(k_x, (N, Cin, D, H, W), dtype=jnp.float32)
    weight = 0.1 * jax.random.normal(k_w, (Cout, Cin, k, k, k), dtype=jnp.float32)
    gamma = 1.0 + 0.1 * jax.random.normal(k_g, (Cout,), dtype=jnp.float32)
    beta = 0.1 * jax.random.normal(k_b, (Cout,), dtype=jnp.float32)
    mean = 0.1 * jax.random.normal(k_m, (Cout,), dtype=jnp.float32)
    var = jnp.abs(1.0 + 0.1 * jax.random.normal(k_v, (Cout,), dtype=jnp.float32))

    out = basic_conv3d(x, weight, gamma, beta, mean, var,
                       stride=stride, padding=padding, dilation=dilation)
    out = jax.block_until_ready(out)

    Do = (D + 2 * padding - dilation * (k - 1) - 1) // stride + 1
    Ho = (H + 2 * padding - dilation * (k - 1) - 1) // stride + 1
    Wo = (W + 2 * padding - dilation * (k - 1) - 1) // stride + 1
    assert out.shape == (N, Cout, Do, Ho, Wo), out.shape

    # Tight check vs. a reference with identically bf16-quantized operands
    # (kernel accumulates in f32, so only summation order differs).
    ref_q = _reference(x, weight, gamma, beta, mean, var, stride=stride,
                       padding=padding, dilation=dilation,
                       quantize_like_kernel=True)
    assert jnp.allclose(out, ref_q, atol=2e-3, rtol=2e-3), \
        float(jnp.max(jnp.abs(out - ref_q)))

    # Loose sanity check vs. the exact f32 reference (bf16 operand rounding).
    ref = _reference(x, weight, gamma, beta, mean, var, stride=stride,
                     padding=padding, dilation=dilation)
    assert jnp.allclose(out, ref, atol=1e-1, rtol=1e-1), \
        float(jnp.max(jnp.abs(out - ref)))


if __name__ == "__main__":
    key = jax.random.PRNGKey(0)
    k1, k2, k3 = jax.random.split(key, 3)

    # 3x3x3, stride 1, padding 1 — the typical BasicConv3d usage in RFB.
    _run_case(k1, N=2, Cin=4, Cout=8, D=4, H=8, W=8, k=3,
              stride=1, padding=1, dilation=1)
    # 1x1x1 projection, no padding.
    _run_case(k2, N=2, Cin=8, Cout=16, D=4, H=8, W=8, k=1,
              stride=1, padding=0, dilation=1)
    # Dilated 3x3x3 branch (padding = dilation), as used in RFB.
    _run_case(k3, N=2, Cin=4, Cout=8, D=4, H=8, W=8, k=3,
              stride=1, padding=2, dilation=2)

    print("KERNEL_OK")
</pallas_src>

<mosaic_0001>
module attributes {stable_mosaic.version = 11 : i64} {
  func.func @_conv3d_bn_gelu_kernel(%arg0: i32, %arg1: i32, %arg2: i32, %arg3: memref<1x10x10x4xbf16, #tpu.memory_space<vmem>>, %arg4: memref<3x36x128xbf16, #tpu.memory_space<vmem>>, %arg5: memref<1x128xf32, #tpu.memory_space<vmem>>, %arg6: memref<1x64x128xf32, #tpu.memory_space<vmem>>, %arg7: memref<64x36xbf16, #tpu.memory_space<vmem>>, %arg8: memref<64x128xf32, #tpu.memory_space<vmem>>) attributes {dimension_semantics = [#tpu.dimension_semantics<parallel>, #tpu.dimension_semantics<parallel>, #tpu.dimension_semantics<arbitrary>], iteration_bounds = array<i64: 2, 4, 3>, scalar_prefetch = 0 : i64, scratch_operands = 2 : i64, tpu.core_type = #tpu.core_type<tc>, window_params = [{transform_indices = @transform_0, window_bounds = array<i64: 1, 10, 10, 4>}, {pipeline_mode = #tpu.pipeline_mode<synchronous>, transform_indices = @transform_1, window_bounds = array<i64: 3, 36, 128>}, {pipeline_mode = #tpu.pipeline_mode<synchronous>, transform_indices = @transform_2, window_bounds = array<i64: 1, 128>}, {transform_indices = @transform_3, window_bounds = array<i64: 1, 64, 128>}]} {
    %c0_i32 = arith.constant 0 : i32
    %0 = arith.cmpi eq, %arg2, %c0_i32 : i32
    %1 = arith.extui %0 : i1 to i32
    %c0_i32_0 = arith.constant 0 : i32
    %2 = arith.cmpi ne, %1, %c0_i32_0 : i32
    scf.if %2 {
      %cst_23 = arith.constant 0.000000e+00 : f32
      %43 = vector.broadcast %cst_23 : f32 to vector<64x128xf32>
      %c0_24 = arith.constant 0 : index
      %c0_25 = arith.constant 0 : index
      %44 = vector.load %arg8[%c0_24, %c0_25] : memref<64x128xf32, #tpu.memory_space<vmem>>, vector<64x128xf32>
      tpu.vector_store %arg8[%c0_24, %c0_25], %43 {strides = array<i32>} : memref<64x128xf32, #tpu.memory_space<vmem>>, vector<64x128xf32>,
    } else {
    }
    %c0 = arith.constant 0 : index
    %c0_1 = arith.constant 0 : index
    %c0_2 = arith.constant 0 : index
    %c0_3 = arith.constant 0 : index
    %3 = vector.load %arg3[%c0, %c0_1, %c0_2, %c0_3] : memref<1x10x10x4xbf16, #tpu.memory_space<vmem>>, vector<1x10x10x4xbf16>
    %4 = vector.shape_cast %3 : vector<1x10x10x4xbf16> to vector<10x10x4xbf16>
    %5 = vector.extract_strided_slice %4 {offsets = [0, 0, 0], sizes = [8, 8, 4], strides = [1, 1, 1]} : vector<10x10x4xbf16> to vector<8x8x4xbf16>
    %6 = vector.shape_cast %5 : vector<8x8x4xbf16> to vector<64x4xbf16>
    %c0_4 = arith.constant 0 : index
    %c0_5 = arith.constant 0 : index
    %7 = vector.load %arg7[%c0_4, %c0_5] : memref<64x36xbf16, #tpu.memory_space<vmem>>, vector<64x4xbf16>
    tpu.vector_store %arg7[%c0_4, %c0_5], %6 {strides = array<i32>} : memref<64x36xbf16, #tpu.memory_space<vmem>>, vector<64x4xbf16>,
    %8 = vector.extract_strided_slice %4 {offsets = [0, 1, 0], sizes = [8, 8, 4], strides = [1, 1, 1]} : vector<10x10x4xbf16> to vector<8x8x4xbf16>
    %9 = vector.shape_cast %8 : vector<8x8x4xbf16> to vector<64x4xbf16>
    %c0_6 = arith.constant 0 : index
    %c4 = arith.constant 4 : index
    %10 = vector.load %arg7[%c0_6, %c4] : memref<64x36xbf16, #tpu.memory_space<vmem>>, vector<64x4xbf16>
    tpu.vector_store %arg7[%c0_6, %c4], %9 {strides = array<i32>} : memref<64x36xbf16, #tpu.memory_space<vmem>>, vector<64x4xbf16>,
    %11 = vector.extract_strided_slice %4 {offsets = [0, 2, 0], sizes = [8, 8, 4], strides = [1, 1, 1]} : vector<10x10x4xbf16> to vector<8x8x4xbf16>
    %12 = vector.shape_cast %11 : vector<8x8x4xbf16> to vector<64x4xbf16>
    %c0_7 = arith.constant 0 : index
    %c8 = arith.constant 8 : index
    %13 = vector.load %arg7[%c0_7, %c8] : memref<64x36xbf16, #tpu.memory_space<vmem>>, vector<64x4xbf16>
    tpu.vector_store %arg7[%c0_7, %c8], %12 {strides = array<i32>} : memref<64x36xbf16, #tpu.memory_space<vmem>>, vector<64x4xbf16>,
    %14 = vector.extract_strided_slice %4 {offsets = [1, 0, 0], sizes = [8, 8, 4], strides = [1, 1, 1]} : vector<10x10x4xbf16> to vector<8x8x4xbf16>
    %15 = vector.shape_cast %14 : vector<8x8x4xbf16> to vector<64x4xbf16>
    %c0_8 = arith.constant 0 : index
    %c12 = arith.constant 12 : index
    %16 = vector.load %arg7[%c0_8, %c12] : memref<64x36xbf16, #tpu.memory_space<vmem>>, vector<64x4xbf16>
    tpu.vector_store %arg7[%c0_8, %c12], %15 {strides = array<i32>} : memref<64x36xbf16, #tpu.memory_space<vmem>>, vector<64x4xbf16>,
    %17 = vector.extract_strided_slice %4 {offsets = [1, 1, 0], sizes = [8, 8, 4], strides = [1, 1, 1]} : vector<10x10x4xbf16> to vector<8x8x4xbf16>
    %18 = vector.shape_cast %17 : vector<8x8x4xbf16> to vector<64x4xbf16>
    %c0_9 = arith.constant 0 : index
    %c16 = arith.constant 16 : index
    %19 = vector.load %arg7[%c0_9, %c16] : memref<64x36xbf16, #tpu.memory_space<vmem>>, vector<64x4xbf16>
    tpu.vector_store %arg7[%c0_9, %c16], %18 {strides = array<i32>} : memref<64x36xbf16, #tpu.memory_space<vmem>>, vector<64x4xbf16>,
    %20 = vector.extract_strided_slice %4 {offsets = [1, 2, 0], sizes = [8, 8, 4], strides = [1, 1, 1]} : vector<10x10x4xbf16> to vector<8x8x4xbf16>
    %21 = vector.shape_cast %20 : vector<8x8x4xbf16> to vector<64x4xbf16>
    %c0_10 = arith.constant 0 : index
    %c20 = arith.constant 20 : index
    %22 = vector.load %arg7[%c0_10, %c20] : memref<64x36xbf16, #tpu.memory_space<vmem>>, vector<64x4xbf16>
    tpu.vector_store %arg7[%c0_10, %c20], %21 {strides = array<i32>} : memref<64x36xbf16, #tpu.memory_space<vmem>>, vector<64x4xbf16>,
    %23 = vector.extract_strided_slice %4 {offsets = [2, 0, 0], sizes = [8, 8, 4], strides = [1, 1, 1]} : vector<10x10x4xbf16> to vector<8x8x4xbf16>
    %24 = vector.shape_cast %23 : vector<8x8x4xbf16> to vector<64x4xbf16>
    %c0_11 = arith.constant 0 : index
    %c24 = arith.constant 24 : index
    %25 = vector.load %arg7[%c0_11, %c24] : memref<64x36xbf16, #tpu.memory_space<vmem>>, vector<64x4xbf16>
    tpu.vector_store %arg7[%c0_11, %c24], %24 {strides = array<i32>} : memref<64x36xbf16, #tpu.memory_space<vmem>>, vector<64x4xbf16>,
    %26 = vector.extract_strided_slice %4 {offsets = [2, 1, 0], sizes = [8, 8, 4], strides = [1, 1, 1]} : vector<10x10x4xbf16> to vector<8x8x4xbf16>
    %27 = vector.shape_cast %26 : vector<8x8x4xbf16> to vector<64x4xbf16>
    %c0_12 = arith.constant 0 : index
    %c28 = arith.constant 28 : index
    %28 = vector.load %arg7[%c0_12, %c28] : memref<64x36xbf16, #tpu.memory_space<vmem>>, vector<64x4xbf16>
    tpu.vector_store %arg7[%c0_12, %c28], %27 {strides = array<i32>} : memref<64x36xbf16, #tpu.memory_space<vmem>>, vector<64x4xbf16>,
    %29 = vector.extract_strided_slice %4 {offsets = [2, 2, 0], sizes = [8, 8, 4], strides = [1, 1, 1]} : vector<10x10x4xbf16> to vector<8x8x4xbf16>
    %30 = vector.shape_cast %29 : vector<8x8x4xbf16> to vector<64x4xbf16>
    %c0_13 = arith.constant 0 : index
    %c32 = arith.constant 32 : index
    %31 = vector.load %arg7[%c0_13, %c32] : memref<64x36xbf16, #tpu.memory_space<vmem>>, vector<64x4xbf16>
    tpu.vector_store %arg7[%c0_13, %c32], %30 {strides = array<i32>} : memref<64x36xbf16, #tpu.memory_space<vmem>>, vector<64x4xbf16>,
    %c0_14 = arith.constant 0 : index
    %c0_15 = arith.constant 0 : index
    %32 = vector.load %arg7[%c0_14, %c0_15] : memref<64x36xbf16, #tpu.memory_space<vmem>>, vector<64x36xbf16>
    %c0_16 = arith.constant 0 : index
    %c0_17 = arith.constant 0 : index
    %33 = vector.load %arg8[%c0_16, %c0_17] : memref<64x128xf32, #tpu.memory_space<vmem>>, vector<64x128xf32>
    %34 = arith.index_cast %arg2 : i32 to index
    %c0_18 = arith.constant 0 : index
    %c0_19 = arith.constant 0 : index
    %35 = vector.load %arg4[%34, %c0_18, %c0_19] : memref<3x36x128xbf16, #tpu.memory_space<vmem>>, vector<1x36x128xbf16>
    %36 = vector.shape_cast %35 : vector<1x36x128xbf16> to vector<36x128xbf16>
    %cst = arith.constant dense<0.000000e+00> : vector<64x128xf32>
    %37 = tpu.matmul %32, %36, %cst {dimension_numbers = #tpu.dot_dimension_numbers<[1], [0], [0], [1], [0, 0, 1, 1], [], []>} : vector<64x36xbf16>, vector<36x128xbf16>, vector<64x128xf32> -> vector<64x128xf32>
    %38 = arith.addf %33, %37 : vector<64x128xf32>
    %c0_20 = arith.constant 0 : index
    %c0_21 = arith.constant 0 : index
    %39 = vector.load %arg8[%c0_20, %c0_21] : memref<64x128xf32, #tpu.memory_space<vmem>>, vector<64x128xf32>
    tpu.vector_store %arg8[%c0_20, %c0_21], %38 {strides = array<i32>} : memref<64x128xf32, #tpu.memory_space<vmem>>, vector<64x128xf32>,
    %c2_i32 = arith.constant 2 : i32
    %40 = arith.cmpi eq, %arg2, %c2_i32 : i32
    %41 = arith.extui %40 : i1 to i32
    %c0_i32_22 = arith.constant 0 : i32
    %42 = arith.cmpi ne, %41, %c0_i32_22 : i32
    scf.if %42 {
      %c0_23 = arith.constant 0 : index
      %c0_24 = arith.constant 0 : index
      %43 = vector.load %arg8[%c0_23, %c0_24] : memref<64x128xf32, #tpu.memory_space<vmem>>, vector<64x128xf32>
      %c0_25 = arith.constant 0 : index
      %c0_26 = arith.constant 0 : index
      %44 = vector.load %arg5[%c0_25, %c0_26] : memref<1x128xf32, #tpu.memory_space<vmem>>, vector<1x128xf32>
      %45 = vector.broadcast %44 : vector<1x128xf32> to vector<64x128xf32>
      %46 = arith.addf %43, %45 : vector<64x128xf32>
      %cst_27 = arith.constant 5.000000e-01 : f32
      %47 = vector.broadcast %cst_27 : f32 to vector<64x128xf32>
      %48 = arith.mulf %47, %46 : vector<64x128xf32>
      %cst_28 = arith.constant 0.707106769 : f32
      %49 = vector.broadcast %cst_28 : f32 to vector<64x128xf32>
      %50 = arith.mulf %46, %49 : vector<64x128xf32>
      %51 = math.erf %50 : vector<64x128xf32>
      %cst_29 = arith.constant 1.000000e+00 : f32
      %52 = vector.broadcast %cst_29 : f32 to vector<64x128xf32>
      %53 = arith.addf %52, %51 : vector<64x128xf32>
      %54 = arith.mulf %48, %53 : vector<64x128xf32>
      %c0_30 = arith.constant 0 : index
      %c0_31 = arith.constant 0 : index
      %c0_32 = arith.constant 0 : index
      %55 = vector.load %arg6[%c0_30, %c0_31, %c0_32] : memref<1x64x128xf32, #tpu.memory_space<vmem>>, vector<1x64x128xf32>
      %56 = vector.shape_cast %55 : vector<1x64x128xf32> to vector<64x128xf32>
      %57 = vector.shape_cast %54 : vector<64x128xf32> to vector<1x64x128xf32>
      tpu.vector_store %arg6[%c0_30, %c0_31, %c0_32], %57 {strides = array<i32>} : memref<1x64x128xf32, #tpu.memory_space<vmem>>, vector<1x64x128xf32>,
    } else {
    }
    return
  }
  func.func @transform_0(%arg0: i32, %arg1: i32, %arg2: i32) -> (i32, i32, i32, i32) {
    %c6_i32 = arith.constant 6 : i32
    %0 = arith.muli %arg0, %c6_i32 : i32
    %c1_i32 = arith.constant 1 : i32
    %1 = arith.muli %arg1, %c1_i32 : i32
    %2 = arith.addi %0, %1 : i32
    %c1_i32_0 = arith.constant 1 : i32
    %3 = arith.muli %arg2, %c1_i32_0 : i32
    %4 = arith.addi %2, %3 : i32
    %c0_i32 = arith.constant 0 : i32
    %c0_i32_1 = arith.constant 0 : i32
    %c0_i32_2 = arith.constant 0 : i32
    %c0_i32_3 = arith.constant 0 : i32
    return %4, %c0_i32, %c0_i32_1, %c0_i32_2 : i32, i32, i32, i32
  }
  func.func @transform_1(%arg0: i32, %arg1: i32, %arg2: i32) -> (i32, i32, i32) {
    %c0_i32 = arith.constant 0 : i32
    %c0_i32_0 = arith.constant 0 : i32
    %c0_i32_1 = arith.constant 0 : i32
    %c0_i32_2 = arith.constant 0 : i32
    return %c0_i32, %c0_i32_0, %c0_i32_1 : i32, i32, i32
  }
  func.func @transform_2(%arg0: i32, %arg1: i32, %arg2: i32) -> (i32, i32) {
    %c0_i32 = arith.constant 0 : i32
    %c0_i32_0 = arith.constant 0 : i32
    %c0_i32_1 = arith.constant 0 : i32
    return %c0_i32, %c0_i32_0 : i32, i32
  }
  func.func @transform_3(%arg0: i32, %arg1: i32, %arg2: i32) -> (i32, i32, i32) {
    %c4_i32 = arith.constant 4 : i32
    %0 = arith.muli %arg0, %c4_i32 : i32
    %1 = arith.addi %0, %arg1 : i32
    %c0_i32 = arith.constant 0 : i32
    %c0_i32_0 = arith.constant 0 : i32
    %c0_i32_1 = arith.constant 0 : i32
    return %1, %c0_i32, %c0_i32_0 : i32, i32, i32
  }
}

</mosaic_0001>

<llo_original>
// kernel: basic_conv3d.1
$region0: #{basic_conv3d.1}
  #allocation0 [shape = 'u32[]', space=smem, size = 0x4, offset = 0x4, fixed_abs, tag = 'smem constant byte address 0x4 - core index']
  #allocation1 [shape = 'u32[144,128]{1,0:T(1,128)}', space=vmem, size = 0x12000, scoped, tag = 'internal scratch']
  #allocation2 [shape = 'bf16[64,36]{1,0:T(16,128)(2,1)}', space=vmem, size = 0x4000, scoped, tag = 'scratch operand']
  #allocation3 [shape = 'f32[64,128]{1,0:T(8,128)}', space=vmem, size = 0x8000, scoped, tag = 'scratch operand']
  %s0 = inlined_call_operand.vmem [shape: bf16[12,10,10,4], index: 0, kind: input, shape index: {}]
  %s1 = inlined_call_operand.vmem [shape: bf16[3,36,128], index: 1, kind: input, shape index: {}]
  %s2 = inlined_call_operand.vmem [shape: f32[1,128], index: 2, kind: input, shape index: {}]
  %s3 = inlined_call_operand.vmem [shape: f32[8,64,128], index: 3, kind: output, shape index: {}]
  %s4 = sld [smem:[#allocation0]]
  $region53: #{basic_conv3d.1} parent=0
    _
  %s6 = ssub.s32 1, %s4
  %s7 = scalar_select 0, %s6, %s4
  loop: start=0, step=1, limit=26
  $region2: #{basic_conv3d.1} parent=0 // loop_pre_header
    _
  $region3: #{basic_conv3d.1} parent=0 // loop_header
    %s9 = sphi 0, %s13
    %p10 = scmp.ge.s32.totalorder %s9, 26
    %s16 = sphi 0, %s35
    %s17 = sphi 0, %s31
    %s18 = sphi 0, %s27
    %s19 = sphi 0, %s16
    %s20 = sphi 0, %s17
    %s21 = sphi 0, %s18
    %s22 = sphi 0, %s19
    %s23 = sphi 0, %s20
    %s24 = sphi 0, %s21
    %s44 = sphi 0, %s46
    %s47 = sphi 0, %s44
    %s48 = sphi 0, %s47
    %s64 = sphi 0, %s48
    %s68 = sphi 0, %s68
    %s70 = sphi 0, %s68
    %s71 = sphi 0, %s70
    %s85 = sphi 0, %s71
    %s89 = sphi 0, %s89
    %s91 = sphi 0, %s89
    %s92 = sphi 0, %s91
    %s106 = sphi 0, %s92
    %s116 = sphi 0, %s118
    %s119 = sphi 0, %s116
    %s120 = sphi 0, %s119
    %s136 = sphi 0, %s120
  $region4: #{basic_conv3d.1} parent=0 // loop_header_branch
    %12 = sbr.rel (%p10) target = $region8
  $region5: #{basic_conv3d.1} parent=0 // loop_body
    %s14 = ssub.s32 %s9, 1
    %s15 = ssub.s32 %s9, 2
    %s25 = sadd.s32 1, %s18
    %p26 = scmp.ge.s32.totalorder %s25, 3
    %s27 = scalar_select %p26, 0, %s25
    %s28 = sadd.s32 1, %s17
    %s29 = scalar_select %p26, %s28, %s17
    %p30 = scmp.ge.s32.totalorder %s29, 4
    %s31 = scalar_select %p30, 0, %s29
    %s32 = sadd.s32 1, %s16
    %s33 = scalar_select %p30, %s32, %s16
    %p34 = scmp.ge.s32.totalorder %s33, 2
    %s35 = scalar_select %p34, 0, %s33
    %s36 = smul.u32 %s16, 6
    %s37 = sadd.s32 %s36, %s17
    %s38 = sadd.s32 %s37, %s18
    %s39 = smul.u32 %s35, 6
    %s40 = sadd.s32 %s39, %s31
    %s41 = sadd.s32 %s40, %s27
    %s42 = ssub.s32 %s38, %s41
    %p43 = scmp.eq.s32.totalorder %s42, 0
    %s45 = sadd.s32 %s44, 1
    %s46 = scalar_select %p43, %s44, %s45
    %p49 = pneg %p43
    %p50 = scmp.eq.s32.totalorder %s9, 23
    %p51 = por %p49, %p50
    %p52 = scmp.ne.s32.totalorder %s44, %s47
    %p53 = scmp.eq.s32.totalorder %s9, 0
    %p54 = por %p52, %p53
    %p55 = scmp.ne.s32.totalorder %s44, %s47
    %p56 = scmp.eq.s32.totalorder %s14, 23
    %p57 = por %p55, %p56
    %p58 = scmp.ne.s32.totalorder %s47, %s48
    %p59 = scmp.eq.s32.totalorder %s14, 0
    %p60 = por %p58, %p59
    %p61 = scmp.ne.s32.totalorder %s47, %s48
    %p62 = scmp.eq.s32.totalorder %s15, 23
    %p63 = por %p61, %p62
    %p65 = scmp.ne.s32.totalorder %s48, %s64
    %p66 = scmp.eq.s32.totalorder %s15, 0
    %p67 = por %p65, %p66
    %s69 = sadd.s32 %s68, 1
    %p72 = scmp.eq.s32.totalorder %s9, 23
    %p73 = scmp.ne.s32.totalorder %s68, %s70
    %p74 = scmp.eq.s32.totalorder %s9, 0
    %p75 = por %p73, %p74
    %p76 = scmp.ne.s32.totalorder %s68, %s70
    %p77 = scmp.eq.s32.totalorder %s14, 23
    %p78 = por %p76, %p77
    %p79 = scmp.ne.s32.totalorder %s70, %s71
    %p80 = scmp.eq.s32.totalorder %s14, 0
    %p81 = por %p79, %p80
    %p82 = scmp.ne.s32.totalorder %s70, %s71
    %p83 = scmp.eq.s32.totalorder %s15, 23
    %p84 = por %p82, %p83
    %p86 = scmp.ne.s32.totalorder %s71, %s85
    %p87 = scmp.eq.s32.totalorder %s15, 0
    %p88 = por %p86, %p87
    %s90 = sadd.s32 %s89, 1
    %p93 = scmp.eq.s32.totalorder %s9, 23
    %p94 = scmp.ne.s32.totalorder %s89, %s91
    %p95 = scmp.eq.s32.totalorder %s9, 0
    %p96 = por %p94, %p95
    %p97 = scmp.ne.s32.totalorder %s89, %s91
    %p98 = scmp.eq.s32.totalorder %s14, 23
    %p99 = por %p97, %p98
    %p100 = scmp.ne.s32.totalorder %s91, %s92
    %p101 = scmp.eq.s32.totalorder %s14, 0
    %p102 = por %p100, %p101
    %p103 = scmp.ne.s32.totalorder %s91, %s92
    %p104 = scmp.eq.s32.totalorder %s15, 23
    %p105 = por %p103, %p104
    %p107 = scmp.ne.s32.totalorder %s92, %s106
    %p108 = scmp.eq.s32.totalorder %s15, 0
    %p109 = por %p107, %p108
    %s110 = smul.u32 %s16, 4
    %s111 = sadd.s32 %s110, %s17
    %s112 = smul.u32 %s35, 4
    %s113 = sadd.s32 %s112, %s31
    %s114 = ssub.s32 %s111, %s113
    %p115 = scmp.eq.s32.totalorder %s114, 0
    %s117 = sadd.s32 %s116, 1
    %s118 = scalar_select %p115, %s116, %s117
    %p121 = pneg %p115
    %p122 = scmp.eq.s32.totalorder %s9, 23
    %p123 = por %p121, %p122
    %p124 = scmp.ne.s32.totalorder %s116, %s119
    %p125 = scmp.eq.s32.totalorder %s9, 0
    %p126 = por %p124, %p125
    %p127 = scmp.ne.s32.totalorder %s116, %s119
    %p128 = scmp.eq.s32.totalorder %s14, 23
    %p129 = por %p127, %p128
    %p130 = scmp.ne.s32.totalorder %s119, %s120
    %p131 = scmp.eq.s32.totalorder %s14, 0
    %p132 = por %p130, %p131
    %p133 = scmp.ne.s32.totalorder %s119, %s120
    %p134 = scmp.eq.s32.totalorder %s15, 23
    %p135 = por %p133, %p134
    %p137 = scmp.ne.s32.totalorder %s120, %s136
    %p138 = scmp.eq.s32.totalorder %s15, 0
    %p139 = por %p137, %p138
    %p140 = scmp.le.s32.totalorder 1, %s9
    %p141 = scmp.lt.s32.totalorder %s9, 25
    %p142 = pnand %p140, %p141
    %p143 = pneg %p142
    // Predicated region
    $region9: #{basic_conv3d.1} parent=5 // pred_check
      _
    $region10: #{basic_conv3d.1} parent=5 // pred_check_branch
      %145 = sbr.rel (%p142) target = $region12
    $region11: #{basic_conv3d.1} parent=5 // pred_region
      %s146 = ssub.s32 %s9, 1
      // Predicated region
      $region13: #{basic_conv3d.1} parent=11 // pred_check
        %p147 = pneg %p81
      $region14: #{basic_conv3d.1} parent=11 // pred_check_branch
        %149 = sbr.rel (%p147) target = $region16
      $region15: #{basic_conv3d.1} parent=11 // pred_region
        _
      $region16: #{basic_conv3d.1} parent=11 // pred_fallthru
        _
      // Predicated region
      $region17: #{basic_conv3d.1} parent=11 // pred_check
        %p150 = pneg %p102
      $region18: #{basic_conv3d.1} parent=11 // pred_check_branch
        %152 = sbr.rel (%p150) target = $region20
      $region19: #{basic_conv3d.1} parent=11 // pred_region
        _
      $region20: #{basic_conv3d.1} parent=11 // pred_fallthru
        _
    $region12: #{basic_conv3d.1} parent=5 // pred_fallthru
      _
    %p153 = scmp.lt.s32.totalorder %s9, 24
    // Predicated region
    $region21: #{basic_conv3d.1} parent=5 // pred_check
      %p154 = pneg %p153
    $region22: #{basic_conv3d.1} parent=5 // pred_check_branch
      %156 = sbr.rel (%p154) target = $region24
    $region23: #{basic_conv3d.1} parent=5 // pred_region
      // Predicated region
      $region25: #{basic_conv3d.1} parent=23 // pred_check
        %p157 = pneg %p54
      $region26: #{basic_conv3d.1} parent=23 // pred_check_branch
        %159 = sbr.rel (%p157) target = $region28
      $region27: #{basic_conv3d.1} parent=23 // pred_region
        %s160 = smul.u32 %s16, 6
        %s161 = sadd.s32 %s160, %s17
        %s162 = sadd.s32 %s161, %s18
        %p163 = scmp.lt.s32.totalorder %s162, 11
        %s164 = scalar_select %p163, %s162, 11
        %s165 = smul.addr %s164, 20
        %s166 = smul.addr %s165, 4
        %s167 = scalar_lea.vmem %s0, %s166
        %s168 = smul.u32 %s16, 6
        %s169 = sadd.s32 %s168, %s17
        %s170 = sadd.s32 %s169, %s18
      $region28: #{basic_conv3d.1} parent=23 // pred_fallthru
        _
    $region24: #{basic_conv3d.1} parent=5 // pred_fallthru
      _
    %p171 = scmp.le.s32.totalorder 1, %s9
    %p172 = scmp.lt.s32.totalorder %s9, 25
    %p173 = pnand %p171, %p172
    %p174 = pneg %p173
    // Predicated region
    $region29: #{basic_conv3d.1} parent=5 // pred_check
      _
    $region30: #{basic_conv3d.1} parent=5 // pred_check_branch
      %176 = sbr.rel (%p173) target = $region32
    $region31: #{basic_conv3d.1} parent=5 // pred_region
      %s177 = ssub.s32 %s9, 1
      %s178 = smul.u32 %s19, 6
      %s179 = sadd.s32 %s178, %s20
      %s180 = sadd.s32 %s179, %s21
      %p181 = scmp.lt.s32.totalorder %s180, 11
      %s182 = scalar_select %p181, %s180, 11
      %s183 = smul.addr %s182, 20
      %s184 = smul.addr %s183, 4
      %s185 = scalar_lea.vmem %s0, %s184
      %p186 = pneg %p60
      %p187 = pneg %p57
      %p188 = pneg %p81
      %p189 = pneg %p78
      %p190 = pneg %p102
      %p191 = pneg %p99
      %p192 = pneg %p132
      %p193 = pneg %p129
      %s194 = smul.u32 %s19, 4
      %s195 = sadd.s32 %s194, %s20
      %p196 = scmp.lt.s32.totalorder %s195, 7
      %s197 = scalar_select %p196, %s195, 7
      %s198 = smul.addr %s197, 8
      %s199 = smul.addr %s198, 8
      %s200 = scalar_lea.vmem %s3, %s199
      %s201 = smul.u32 %s19, 6
      %s202 = sadd.s32 %s201, %s20
      %s203 = sadd.s32 %s202, %s21
      %p204 = scmp.lt.s32.totalorder %s203, 11
      %s205 = scalar_select %p204, %s203, 11
      %s206 = smul.addr %s205, 20
      %s207 = smul.addr %s206, 4
      %s208 = scalar_lea.vmem %s0, %s207
      %s209 = smul.u32 %s19, 6
      %s210 = sadd.s32 %s209, %s20
      %s211 = sadd.s32 %s210, %s21
      %s212 = smul.u32 %s19, 4
      %s213 = sadd.s32 %s212, %s20
      %p214 = scmp.lt.s32.totalorder %s213, 7
      %s215 = scalar_select %p214, %s213, 7
      %s216 = smul.addr %s215, 8
      %s217 = smul.addr %s216, 8
      %s218 = scalar_lea.vmem %s3, %s217
      %s219 = smul.u32 %s19, 4
      %s220 = sadd.s32 %s219, %s20
      %p222 = scmp.eq.s32.totalorder %s21, 0
      // Predicated region
      $region33: #{basic_conv3d.1} parent=31 // pred_check
        %p223 = pneg %p222
      $region34: #{basic_conv3d.1} parent=31 // pred_check_branch
        %225 = sbr.rel (%p223) target = $region36
      $region35: #{basic_conv3d.1} parent=31 // pred_region
        %226 = vst [vmem:[#allocation3] sm:$0xff] 0.0
        %227 = vst [vmem:[#allocation3 + $0x8] sm:$0xff] 0.0
        %228 = vst [vmem:[#allocation3 + $0x10] sm:$0xff] 0.0
        %229 = vst [vmem:[#allocation3 + $0x18] sm:$0xff] 0.0
        %230 = vst [vmem:[#allocation3 + $0x20] sm:$0xff] 0.0
        %231 = vst [vmem:[#allocation3 + $0x28] sm:$0xff] 0.0
        %232 = vst [vmem:[#allocation3 + $0x30] sm:$0xff] 0.0
        %233 = vst [vmem:[#allocation3 + $0x38] sm:$0xff] 0.0
      $region36: #{basic_conv3d.1} parent=31 // pred_fallthru
        _
      %v234 = vld [vmem:[%s208] sm:$0xf]
      %v235 = vld [vmem:[%s208 + $0x4] sm:$0x1]
      %v236 = vld [vmem:[%s208 + $0x8] sm:$0xf]
      %v237 = vld [vmem:[%s208 + $0xc] sm:$0x1]
      %v238 = vld [vmem:[%s208 + $0x10] sm:$0xf]
      %v239 = vld [vmem:[%s208 + $0x14] sm:$0x1]
      %v240 = vld [vmem:[%s208 + $0x18] sm:$0xf]
      %v241 = vld [vmem:[%s208 + $0x1c] sm:$0x1]
      %v242 = vld [vmem:[%s208 + $0x20] sm:$0xf]
      %v243 = vld [vmem:[%s208 + $0x24] sm:$0x1]
      %v244 = vld [vmem:[%s208 + $0x28] sm:$0xf]
      %v245 = vld [vmem:[%s208 + $0x2c] sm:$0x1]
      %v246 = vld [vmem:[%s208 + $0x30] sm:$0xf]
      %v247 = vld [vmem:[%s208 + $0x34] sm:$0x1]
      %v248 = vld [vmem:[%s208 + $0x38] sm:$0xf]
      %v249 = vld [vmem:[%s208 + $0x3c] sm:$0x1]
      %v250 = vld [vmem:[%s208 + $0x40] sm:$0xf]
      %v251 = vld [vmem:[%s208 + $0x44] sm:$0x1]
      %v252 = vld [vmem:[%s208 + $0x48] sm:$0xf]
      %v253 = vld [vmem:[%s208 + $0x4c] sm:$0x1]
      %v262 = vunpack.c.l.b16 %v234
      %v263 = vunpack.c.l.b16 %v236
      %v264 = vunpack.c.l.b16 %v238
      %v265 = vunpack.c.l.b16 %v240
      %v266 = vunpack.c.l.b16 %v242
      %v267 = vunpack.c.l.b16 %v244
      %v268 = vunpack.c.l.b16 %v246
      %v269 = vunpack.c.l.b16 %v248
      %v270 = vpack.c.b16 %v263, %v262
      %v271 = vpack.c.b16 %v265, %v264
      %v272 = vpack.c.b16 %v267, %v266
      %v273 = vpack.c.b16 %v269, %v268
      %vm278 = vcmask 31744
      %279 = vst.msk [vmem:[#allocation2] sm:$0xff] %vm278, %v270
      %280 = vst.msk [vmem:[#allocation2 + $0x8] sm:$0xff] %vm278, %v271
      %281 = vst.msk [vmem:[#allocation2 + $0x10] sm:$0xff] %vm278, %v272
      %282 = vst.msk [vmem:[#allocation2 + $0x18] sm:$0xff] %vm278, %v273
      %vm283 = vsmask.f32 3328
      %vm284 = vsmask.f32 7440
      %vm285 = vmor %vm283, %vm284
      %v287 = vshrl.u32 %v234, 16
      %v289 = vrot.slane %v287, 4
      %v290 = vshll.u32 %v234, 16
      %v292 = vrot.slane %v290, 5
      %v293 = vor.u32 %v289, %v292
      %v294 = vrot.slane %v293, 4
      %v296 = vshll.u32 %v235, 16
      %v298 = vrot.slane %v296, 5
      %v299 = vsel %vm285, %v294, %v298
      %v301 = vshrl.u32 %v236, 16
      %v303 = vrot.slane %v301, 4
      %v304 = vshll.u32 %v236, 16
      %v306 = vrot.slane %v304, 5
      %v307 = vor.u32 %v303, %v306
      %v308 = vrot.slane %v307, 4
      %v310 = vshll.u32 %v237, 16
      %v312 = vrot.slane %v310, 5
      %v313 = vsel %vm285, %v308, %v312
      %v315 = vshrl.u32 %v238, 16
      %v317 = vrot.slane %v315, 4
      %v318 = vshll.u32 %v238, 16
      %v320 = vrot.slane %v318, 5
      %v321 = vor.u32 %v317, %v320
      %v322 = vrot.slane %v321, 4
      %v324 = vshll.u32 %v239, 16
      %v326 = vrot.slane %v324, 5
      %v327 = vsel %vm285, %v322, %v326
      %v329 = vshrl.u32 %v240, 16
      %v331 = vrot.slane %v329, 4
      %v332 = vshll.u32 %v240, 16
      %v334 = vrot.slane %v332, 5
      %v335 = vor.u32 %v331, %v334
      %v336 = vrot.slane %v335, 4
      %v338 = vshll.u32 %v241, 16
      %v340 = vrot.slane %v338, 5
      %v341 = vsel %vm285, %v336, %v340
      %v343 = vshrl.u32 %v242, 16
      %v345 = vrot.slane %v343, 4
      %v346 = vshll.u32 %v242, 16
      %v348 = vrot.slane %v346, 5
      %v349 = vor.u32 %v345, %v348
      %v350 = vrot.slane %v349, 4
      %v352 = vshll.u32 %v243, 16
      %v354 = vrot.slane %v352, 5
      %v355 = vsel %vm285, %v350, %v354
      %v357 = vshrl.u32 %v244, 16
      %v359 = vrot.slane %v357, 4
      %v360 = vshll.u32 %v244, 16
      %v362 = vrot.slane %v360, 5
      %v363 = vor.u32 %v359, %v362
      %v364 = vrot.slane %v363, 4
      %v366 = vshll.u32 %v245, 16
      %v368 = vrot.slane %v366, 5
      %v369 = vsel %vm285, %v364, %v368
      %v371 = vshrl.u32 %v246, 16
      %v373 = vrot.slane %v371, 4
      %v374 = vshll.u32 %v246, 16
      %v376 = vrot.slane %v374, 5
      %v377 = vor.u32 %v373, %v376
      %v378 = vrot.slane %v377, 4
      %v380 = vshll.u32 %v247, 16
      %v382 = vrot.slane %v380, 5
      %v383 = vsel %vm285, %v378, %v382
      %v385 = vshrl.u32 %v248, 16
      %v387 = vrot.slane %v385, 4
      %v388 = vshll.u32 %v248, 16
      %v390 = vrot.slane %v388, 5
      %v391 = vor.u32 %v387, %v390
      %v392 = vrot.slane %v391, 4
      %v394 = vshll.u32 %v249, 16
      %v396 = vrot.slane %v394, 5
      %v397 = vsel %vm285, %v392, %v396
      %v398 = vunpack.c.l.b16 %v299
      %v399 = vunpack.c.l.b16 %v313
      %v400 = vunpack.c.l.b16 %v327
      %v401 = vunpack.c.l.b16 %v341
      %v402 = vunpack.c.l.b16 %v355
      %v403 = vunpack.c.l.b16 %v369
      %v404 = vunpack.c.l.b16 %v383
      %v405 = vunpack.c.l.b16 %v397
      %v406 = vpack.c.b16 %v399, %v398
      %v407 = vpack.c.b16 %v401, %v400
      %v408 = vpack.c.b16 %v403, %v402
      %v409 = vpack.c.b16 %v405, %v404
      %410 = vrot.lane.b32.xlu0 %v406, 4
      %v411 = vpop.permute.xlu0 %410
      %412 = vrot.lane.b32.xlu0 %v407, 4
      %v413 = vpop.permute.xlu0 %412
      %414 = vrot.lane.b32.xlu0 %v408, 4
      %v415 = vpop.permute.xlu0 %414
      %416 = vrot.lane.b32.xlu0 %v409, 4
      %v417 = vpop.permute.xlu0 %416
      %vm422 = vcmask 64544
      %423 = vst.msk [vmem:[#allocation2] sm:$0xff] %vm422, %v411
      %424 = vst.msk [vmem:[#allocation2 + $0x8] sm:$0xff] %vm422, %v413
      %425 = vst.msk [vmem:[#allocation2 + $0x10] sm:$0xff] %vm422, %v415
      %426 = vst.msk [vmem:[#allocation2 + $0x18] sm:$0xff] %vm422, %v417
      %vm435 = vcmask 1042432
      %vm436 = vcmask 1046532
      %vm437 = vmor %vm435, %vm436
      %v438 = vrot.slane %v234, 5
      %v439 = vrot.slane %v438, 4
      %v440 = vrot.slane %v235, 5
      %v441 = vsel %vm437, %v439, %v440
      %v442 = vrot.slane %v236, 5
      %v443 = vrot.slane %v442, 4
      %v444 = vrot.slane %v237, 5
      %v445 = vsel %vm437, %v443, %v444
      %v446 = vrot.slane %v238, 5
      %v447 = vrot.slane %v446, 4
      %v448 = vrot.slane %v239, 5
      %v449 = vsel %vm437, %v447, %v448
      %v450 = vrot.slane %v240, 5
      %v451 = vrot.slane %v450, 4
      %v452 = vrot.slane %v241, 5
      %v453 = vsel %vm437, %v451, %v452
      %v454 = vrot.slane %v242, 5
      %v455 = vrot.slane %v454, 4
      %v456 = vrot.slane %v243, 5
      %v457 = vsel %vm437, %v455, %v456
      %v458 = vrot.slane %v244, 5
      %v459 = vrot.slane %v458, 4
      %v460 = vrot.slane %v245, 5
      %v461 = vsel %vm437, %v459, %v460
      %v462 = vrot.slane %v246, 5
      %v463 = vrot.slane %v462, 4
      %v464 = vrot.slane %v247, 5
      %v465 = vsel %vm437, %v463, %v464
      %v466 = vrot.slane %v248, 5
      %v467 = vrot.slane %v466, 4
      %v468 = vrot.slane %v249, 5
      %v469 = vsel %vm437, %v467, %v468
      %v470 = vunpack.c.l.b16 %v441
      %v471 = vunpack.c.l.b16 %v445
      %v472 = vunpack.c.l.b16 %v449
      %v473 = vunpack.c.l.b16 %v453
      %v474 = vunpack.c.l.b16 %v457
      %v475 = vunpack.c.l.b16 %v461
      %v476 = vunpack.c.l.b16 %v465
      %v477 = vunpack.c.l.b16 %v469
      %v478 = vpack.c.b16 %v471, %v470
      %v479 = vpack.c.b16 %v473, %v472
      %v480 = vpack.c.b16 %v475, %v474
      %v481 = vpack.c.b16 %v477, %v476
      %482 = vrot.lane.b32.xlu0 %v478, 8
      %v483 = vpop.permute.xlu0 %482
      %484 = vrot.lane.b32.xlu0 %v479, 8
      %v485 = vpop.permute.xlu0 %484
      %486 = vrot.lane.b32.xlu0 %v480, 8
      %v487 = vpop.permute.xlu0 %486
      %488 = vrot.lane.b32.xlu0 %v481, 8
      %v489 = vpop.permute.xlu0 %488
      %vm494 = vcmask 97344
      %495 = vst.msk [vmem:[#allocation2] sm:$0xff] %vm494, %v483
      %496 = vst.msk [vmem:[#allocation2 + $0x8] sm:$0xff] %vm494, %v485
      %497 = vst.msk [vmem:[#allocation2 + $0x10] sm:$0xff] %vm494, %v487
      %498 = vst.msk [vmem:[#allocation2 + $0x18] sm:$0xff] %vm494, %v489
      %v500 = vunpack.c.l.b16 %v250
      %v501 = vpack.c.b16 %v264, %v263
      %v502 = vpack.c.b16 %v266, %v265
      %v503 = vpack.c.b16 %v268, %v267
      %v504 = vpack.c.b16 %v500, %v269
      %505 = vrot.lane.b32.xlu0 %v501, 12
      %v506 = vpop.permute.xlu0 %505
      %507 = vrot.lane.b32.xlu0 %v502, 12
      %v508 = vpop.permute.xlu0 %507
      %509 = vrot.lane.b32.xlu0 %v503, 12
      %v510 = vpop.permute.xlu0 %509
      %511 = vrot.lane.b32.xlu0 %v504, 12
      %v512 = vpop.permute.xlu0 %511
      %vm517 = vcmask 130144
      %518 = vst.msk [vmem:[#allocation2] sm:$0xff] %vm517, %v506
      %519 = vst.msk [vmem:[#allocation2 + $0x8] sm:$0xff] %vm517, %v508
      %520 = vst.msk [vmem:[#allocation2 + $0x10] sm:$0xff] %vm517, %v510
      %521 = vst.msk [vmem:[#allocation2 + $0x18] sm:$0xff] %vm517, %v512
      %v523 = vshrl.u32 %v250, 16
      %v525 = vrot.slane %v523, 4
      %v526 = vshll.u32 %v250, 16
      %v528 = vrot.slane %v526, 5
      %v529 = vor.u32 %v525, %v528
      %v530 = vrot.slane %v529, 4
      %v532 = vshll.u32 %v251, 16
      %v534 = vrot.slane %v532, 5
      %v535 = vsel %vm285, %v530, %v534
      %v536 = vunpack.c.l.b16 %v535
      %v537 = vpack.c.b16 %v400, %v399
      %v538 = vpack.c.b16 %v402, %v401
      %v539 = vpack.c.b16 %v404, %v403
      %v540 = vpack.c.b16 %v536, %v405
      %541 = vrot.lane.b32.xlu0 %v537, 16
      %v542 = vpop.permute.xlu0 %541
      %543 = vrot.lane.b32.xlu0 %v538, 16
      %v544 = vpop.permute.xlu0 %543
      %545 = vrot.lane.b32.xlu0 %v539, 16
      %v546 = vpop.permute.xlu0 %545
      %547 = vrot.lane.b32.xlu0 %v540, 16
      %v548 = vpop.permute.xlu0 %547
      %vm553 = vcmask 162944
      %554 = vst.msk [vmem:[#allocation2] sm:$0xff] %vm553, %v542
      %555 = vst.msk [vmem:[#allocation2 + $0x8] sm:$0xff] %vm553, %v544
      %556 = vst.msk [vmem:[#allocation2 + $0x10] sm:$0xff] %vm553, %v546
      %557 = vst.msk [vmem:[#allocation2 + $0x18] sm:$0xff] %vm553, %v548
      %v559 = vrot.slane %v250, 5
      %v560 = vrot.slane %v559, 4
      %v561 = vrot.slane %v251, 5
      %v562 = vsel %vm437, %v560, %v561
      %v563 = vunpack.c.l.b16 %v562
      %v564 = vpack.c.b16 %v472, %v471
      %v565 = vpack.c.b16 %v474, %v473
      %v566 = vpack.c.b16 %v476, %v475
      %v567 = vpack.c.b16 %v563, %v477
      %568 = vrot.lane.b32.xlu0 %v564, 20
      %v569 = vpop.permute.xlu0 %568
      %570 = vrot.lane.b32.xlu0 %v565, 20
      %v571 = vpop.permute.xlu0 %570
      %572 = vrot.lane.b32.xlu0 %v566, 20
      %v573 = vpop.permute.xlu0 %572
      %574 = vrot.lane.b32.xlu0 %v567, 20
      %v575 = vpop.permute.xlu0 %574
      %vm580 = vcmask 195744
      %581 = vst.msk [vmem:[#allocation2] sm:$0xff] %vm580, %v569
      %582 = vst.msk [vmem:[#allocation2 + $0x8] sm:$0xff] %vm580, %v571
      %583 = vst.msk [vmem:[#allocation2 + $0x10] sm:$0xff] %vm580, %v573
      %584 = vst.msk [vmem:[#allocation2 + $0x18] sm:$0xff] %vm580, %v575
      %v586 = vunpack.c.l.b16 %v252
      %v587 = vpack.c.b16 %v586, %v500
      %588 = vrot.lane.b32.xlu0 %v271, 24
      %v589 = vpop.permute.xlu0 %588
      %590 = vrot.lane.b32.xlu0 %v272, 24
      %v591 = vpop.permute.xlu0 %590
      %592 = vrot.lane.b32.xlu0 %v273, 24
      %v593 = vpop.permute.xlu0 %592
      %594 = vrot.lane.b32.xlu0 %v587, 24
      %v595 = vpop.permute.xlu0 %594
      %vm600 = vcmask 228544
      %601 = vst.msk [vmem:[#allocation2] sm:$0xff] %vm600, %v589
      %602 = vst.msk [vmem:[#allocation2 + $0x8] sm:$0xff] %vm600, %v591
      %603 = vst.msk [vmem:[#allocation2 + $0x10] sm:$0xff] %vm600, %v593
      %604 = vst.msk [vmem:[#allocation2 + $0x18] sm:$0xff] %vm600, %v595
      %v606 = vshrl.u32 %v252, 16
      %v608 = vrot.slane %v606, 4
      %v609 = vshll.u32 %v252, 16
      %v611 = vrot.slane %v609, 5
      %v612 = vor.u32 %v608, %v611
      %v613 = vrot.slane %v612, 4
      %v615 = vshll.u32 %v253, 16
      %v617 = vrot.slane %v615, 5
      %v618 = vsel %vm285, %v613, %v617
      %v619 = vunpack.c.l.b16 %v618
      %v620 = vpack.c.b16 %v619, %v536
      %621 = vrot.lane.b32.xlu0 %v407, 28
      %v622 = vpop.permute.xlu0 %621
      %623 = vrot.lane.b32.xlu0 %v408, 28
      %v624 = vpop.permute.xlu0 %623
      %625 = vrot.lane.b32.xlu0 %v409, 28
      %v626 = vpop.permute.xlu0 %625
      %627 = vrot.lane.b32.xlu0 %v620, 28
      %v628 = vpop.permute.xlu0 %627
      %vm633 = vcmask 261344
      %634 = vst.msk [vmem:[#allocation2] sm:$0xff] %vm633, %v622
      %635 = vst.msk [vmem:[#allocation2 + $0x8] sm:$0xff] %vm633, %v624
      %636 = vst.msk [vmem:[#allocation2 + $0x10] sm:$0xff] %vm633, %v626
      %637 = vst.msk [vmem:[#allocation2 + $0x18] sm:$0xff] %vm633, %v628
      %v639 = vrot.slane %v252, 5
      %v640 = vrot.slane %v639, 4
      %v641 = vrot.slane %v253, 5
      %v642 = vsel %vm437, %v640, %v641
      %v643 = vunpack.c.l.b16 %v642
      %v644 = vpack.c.b16 %v643, %v563
      %645 = vrot.lane.b32.xlu0 %v479, 32
      %v646 = vpop.permute.xlu0 %645
      %647 = vrot.lane.b32.xlu0 %v480, 32
      %v648 = vpop.permute.xlu0 %647
      %649 = vrot.lane.b32.xlu0 %v481, 32
      %v650 = vpop.permute.xlu0 %649
      %651 = vrot.lane.b32.xlu0 %v644, 32
      %v652 = vpop.permute.xlu0 %651
      %vm657 = vcmask 294144
      %658 = vst.msk [vmem:[#allocation2] sm:$0xff] %vm657, %v646
      %659 = vst.msk [vmem:[#allocation2 + $0x8] sm:$0xff] %vm657, %v648
      %660 = vst.msk [vmem:[#allocation2 + $0x10] sm:$0xff] %vm657, %v650
      %661 = vst.msk [vmem:[#allocation2 + $0x18] sm:$0xff] %vm657, %v652
      %v662 = vld [vmem:[#allocation2] sm:$0xff]
      %v663 = vld [vmem:[#allocation2 + $0x8] sm:$0xff]
      %v664 = vld [vmem:[#allocation2 + $0x10] sm:$0xff]
      %v665 = vld [vmem:[#allocation2 + $0x18] sm:$0xff]
      %v666 = vld [vmem:[#allocation3] sm:$0xff]
      %v667 = vld [vmem:[#allocation3 + $0x8] sm:$0xff]
      %v668 = vld [vmem:[#allocation3 + $0x10] sm:$0xff]
      %v669 = vld [vmem:[#allocation3 + $0x18] sm:$0xff]
      %v670 = vld [vmem:[#allocation3 + $0x20] sm:$0xff]
      %v671 = vld [vmem:[#allocation3 + $0x28] sm:$0xff]
      %v672 = vld [vmem:[#allocation3 + $0x30] sm:$0xff]
      %v673 = vld [vmem:[#allocation3 + $0x38] sm:$0xff]
      %s674 = smul.u32 %s21, 5
      %s675 = smul.addr %s674, 4
      %s676 = scalar_lea.vmem %s1, %s675
      %v677 = vld [vmem:[%s676] sm:$0xf]
      %v678 = vld [vmem:[%s676 + $0x4] sm:$0xf]
      %v679 = vld [vmem:[%s676 + $0x8] sm:$0xf]
      %v680 = vld [vmem:[%s676 + $0xc] sm:$0xf]
      %v681 = vld [vmem:[%s676 + $0x10] sm:$0x3]
      %v687 = vunpack.c.l.b16 %v677
      %v688 = vunpack.c.l.b16 %v678
      %v689 = vunpack.c.l.b16 %v679
      %v690 = vunpack.c.l.b16 %v680
      %v691 = vunpack.c.l.b16 %v681
      %v692 = vpack.c.b16 %v688, %v687
      %v693 = vpack.c.b16 %v690, %v689
      %v694 = vpack.c.b16 %v691, %v691
      %vm697 = vcmask 293888
      %v699 = vsel %vm697, %v662, 0
      %v702 = vsel %vm697, %v663, 0
      %v705 = vsel %vm697, %v664, 0
      %v708 = vsel %vm697, %v665, 0
      %vm710 = vcmask 1041408
      %v712 = vsel %vm710, %v694, 0
      %714 = vmatprep.subr.bf16.mxu0 0
      %715 = vmatpush1.bf16.msra.mxu0 %v692
      %716 = vmatprep.subr.bf16.mxu0 0
      %717 = vmatpush1.bf16.msra.mxu0 %v693
      %718 = vmatprep.subr.bf16.mxu0 0
      %719 = vmatpush1.bf16.msra.mxu0 %v712
      %720 = vmatprep.subr.bf16.mxu0 0
      %721 = vmatpush1.bf16.msra.mxu0 0
      %722 = vmatprep.subr.bf16.mxu0 0
      %723 = vmatpush1.bf16.msra.mxu0 0
      %724 = vmatprep.subr.bf16.mxu0 0
      %725 = vmatpush1.bf16.msra.mxu0 0
      %726 = vmatprep.subr.bf16.mxu0 0
      %727 = vmatpush1.bf16.msra.mxu0 0
      %728 = vmatprep.subr.bf16.mxu0 0
      %729 = vmatpush1.bf16.msra.mxu0 0
      %730 = vmatprep.subr.bf16.mxu0 0
      %731 = vmatpush1.bf16.msra.mxu0 0
      %732 = vmatprep.subr.bf16.mxu0 0
      %733 = vmatpush1.bf16.msra.mxu0 0
      %734 = vmatprep.subr.bf16.mxu0 0
      %735 = vmatpush1.bf16.msra.mxu0 0
      %736 = vmatprep.subr.bf16.mxu0 0
      %737 = vmatpush1.bf16.msra.mxu0 0
      %738 = vmatprep.subr.bf16.mxu0 0
      %739 = vmatpush1.bf16.msra.mxu0 0
      %740 = vmatprep.subr.bf16.mxu0 0
      %741 = vmatpush1.bf16.msra.mxu0 0
      %742 = vmatprep.subr.bf16.mxu0 0
      %743 = vmatpush1.bf16.msra.mxu0 0
      %744 = vmatprep.subr.bf16.mxu0 0
      %745 = vmatpush1.bf16.msra.mxu0 0
      %746 = vmatprep.mubr.bf16.mxu0 0
      %747 = vmatmul.mubr.bf16.gmra.mrb[0].mxu0 %v699
      %v748 = vpop.f32.mrb[0].mxu0
      %v749 = vadd.f32 0.0, %v748
      %v750 = vpop.f32.mrb[0].mxu0
      %v751 = vpop.f32.mrb[0].mxu0
      %v752 = vadd.f32 0.0, %v751
      %v753 = vpop.f32.mrb[0].mxu0
      %754 = vmatprep.mubr.bf16.mxu0 0
      %755 = vmatmul.mubr.bf16.gmra.mrb[0].mxu0 %v702
      %v756 = vpop.f32.mrb[0].mxu0
      %v757 = vadd.f32 0.0, %v756
      %v758 = vpop.f32.mrb[0].mxu0
      %v759 = vpop.f32.mrb[0].mxu0
      %v760 = vadd.f32 0.0, %v759
      %v761 = vpop.f32.mrb[0].mxu0
      %762 = vmatprep.mubr.bf16.mxu0 0
      %763 = vmatmul.mubr.bf16.gmra.mrb[0].mxu0 %v705
      %v764 = vpop.f32.mrb[0].mxu0
      %v765 = vadd.f32 0.0, %v764
      %v766 = vpop.f32.mrb[0].mxu0
      %v767 = vpop.f32.mrb[0].mxu0
      %v768 = vadd.f32 0.0, %v767
      %v769 = vpop.f32.mrb[0].mxu0
      %770 = vmatprep.mubr.bf16.mxu0 0
      %771 = vmatmul.mubr.bf16.gmra.mrb[0].mxu0 %v708
      %v772 = vpop.f32.mrb[0].mxu0
      %v773 = vadd.f32 0.0, %v772
      %v774 = vpop.f32.mrb[0].mxu0
      %v775 = vpop.f32.mrb[0].mxu0
      %v776 = vadd.f32 0.0, %v775
      %v777 = vpop.f32.mrb[0].mxu0
      %778 = vdwg.mxu0
      %v779 = vadd.f32 %v666, %v749
      %v780 = vadd.f32 %v667, %v752
      %v781 = vadd.f32 %v668, %v757
      %v782 = vadd.f32 %v669, %v760
      %v783 = vadd.f32 %v670, %v765
      %v784 = vadd.f32 %v671, %v768
      %v785 = vadd.f32 %v672, %v773
      %v786 = vadd.f32 %v673, %v776
      %787 = vst [vmem:[#allocation3] sm:$0xff] %v779
      %788 = vst [vmem:[#allocation3 + $0x8] sm:$0xff] %v780
      %789 = vst [vmem:[#allocation3 + $0x10] sm:$0xff] %v781
      %790 = vst [vmem:[#allocation3 + $0x18] sm:$0xff] %v782
      %791 = vst [vmem:[#allocation3 + $0x20] sm:$0xff] %v783
      %792 = vst [vmem:[#allocation3 + $0x28] sm:$0xff] %v784
      %793 = vst [vmem:[#allocation3 + $0x30] sm:$0xff] %v785
      %794 = vst [vmem:[#allocation3 + $0x38] sm:$0xff] %v786
      %p795 = scmp.eq.s32.totalorder %s21, 2
      // Predicated region
      $region37: #{basic_conv3d.1} parent=31 // pred_check
        %p796 = pneg %p795
      $region38: #{basic_conv3d.1} parent=31 // pred_check_branch
        %798 = sbr.rel (%p796) target = $region40
      $region39: #{basic_conv3d.1} parent=31 // pred_region
        %v799 = vld [vmem:[#allocation3] sm:$0xff]
        %v800 = vld [vmem:[#allocation3 + $0x8] sm:$0xff]
        %v801 = vld [vmem:[#allocation3 + $0x10] sm:$0xff]
        %v802 = vld [vmem:[#allocation3 + $0x18] sm:$0xff]
        %v803 = vld [vmem:[#allocation3 + $0x20] sm:$0xff]
        %v804 = vld [vmem:[#allocation3 + $0x28] sm:$0xff]
        %v805 = vld [vmem:[#allocation3 + $0x30] sm:$0xff]
        %v806 = vld [vmem:[#allocation3 + $0x38] sm:$0xff]
        %v807 = vld [vmem:[%s2] sm:$0x1]
        %v809 = vlaneseq
        %v810 = vshrl.u32 %v809, 7
        %v811 = vsub.s32 0, %v810
        %v812 = vrot.slane %v807, %v811
        %v814 = vadd.f32 %v799, %v812
        %v815 = vadd.f32 %v800, %v812
        %v816 = vadd.f32 %v801, %v812
        %v817 = vadd.f32 %v802, %v812
        %v818 = vadd.f32 %v803, %v812
        %v819 = vadd.f32 %v804, %v812
        %v820 = vadd.f32 %v805, %v812
        %v821 = vadd.f32 %v806, %v812
        %v822 = vmul.f32 %v814, 0.5
        %v823 = vmul.f32 %v815, 0.5
        %v824 = vmul.f32 %v816, 0.5
        %v825 = vmul.f32 %v817, 0.5
        %v826 = vmul.f32 %v818, 0.5
        %v827 = vmul.f32 %v819, 0.5
        %v828 = vmul.f32 %v820, 0.5
        %v829 = vmul.f32 %v821, 0.5
        %v830 = vmul.f32 %v814, 0.70710677
        %v831 = vmul.f32 %v815, 0.70710677
        %v832 = vmul.f32 %v816, 0.70710677
        %v833 = vmul.f32 %v817, 0.70710677
        %v834 = vmul.f32 %v818, 0.70710677
        %v835 = vmul.f32 %v819, 0.70710677
        %v836 = vmul.f32 %v820, 0.70710677
        %v837 = vmul.f32 %v821, 0.70710677
        %v838 = verf.f32.pop %v830
        %v839 = verf.f32.pop %v831
        %v840 = verf.f32.pop %v832
        %v841 = verf.f32.pop %v833
        %v842 = verf.f32.pop %v834
        %v843 = verf.f32.pop %v835
        %v844 = verf.f32.pop %v836
        %v845 = verf.f32.pop %v837
        %v846 = vadd.f32 %v838, 1.0
        %v847 = vadd.f32 %v839, 1.0
        %v848 = vadd.f32 %v840, 1.0
        %v849 = vadd.f32 %v841, 1.0
        %v850 = vadd.f32 %v842, 1.0
        %v851 = vadd.f32 %v843, 1.0
        %v852 = vadd.f32 %v844, 1.0
        %v853 = vadd.f32 %v845, 1.0
        %v854 = vmul.f32 %v822, %v846
        %v855 = vmul.f32 %v823, %v847
        %v856 = vmul.f32 %v824, %v848
        %v857 = vmul.f32 %v825, %v849
        %v858 = vmul.f32 %v826, %v850
        %v859 = vmul.f32 %v827, %v851
        %v860 = vmul.f32 %v828, %v852
        %v861 = vmul.f32 %v829, %v853
        %862 = vst [vmem:[%s218] sm:$0xff] %v854
        %863 = vst [vmem:[%s218 + $0x8] sm:$0xff] %v855
        %864 = vst [vmem:[%s218 + $0x10] sm:$0xff] %v856
        %865 = vst [vmem:[%s218 + $0x18] sm:$0xff] %v857
        %866 = vst [vmem:[%s218 + $0x20] sm:$0xff] %v858
        %867 = vst [vmem:[%s218 + $0x28] sm:$0xff] %v859
        %868 = vst [vmem:[%s218 + $0x30] sm:$0xff] %v860
        %869 = vst [vmem:[%s218 + $0x38] sm:$0xff] %v861
      $region40: #{basic_conv3d.1} parent=31 // pred_fallthru
        _
      %s870 = smul.u32 %s19, 4
      %s871 = sadd.s32 %s870, %s20
      %p872 = scmp.lt.s32.totalorder %s871, 7
      %s873 = scalar_select %p872, %s871, 7
      %s874 = smul.addr %s873, 8
      %s875 = smul.addr %s874, 8
      %s876 = scalar_lea.vmem %s3, %s875
      // Predicated region
      $region41: #{basic_conv3d.1} parent=31 // pred_check
        %p877 = pneg %p129
      $region42: #{basic_conv3d.1} parent=31 // pred_check_branch
        %879 = sbr.rel (%p877) target = $region44
      $region43: #{basic_conv3d.1} parent=31 // pred_region
        %s880 = smul.u32 %s19, 4
        %s881 = sadd.s32 %s880, %s20
      $region44: #{basic_conv3d.1} parent=31 // pred_fallthru
        _
    $region32: #{basic_conv3d.1} parent=5 // pred_fallthru
      _
    %p882 = scmp.le.s32.totalorder 2, %s9
    // Predicated region
    $region45: #{basic_conv3d.1} parent=5 // pred_check
      %p883 = pneg %p882
    $region46: #{basic_conv3d.1} parent=5 // pred_check_branch
      %885 = sbr.rel (%p883) target = $region48
    $region47: #{basic_conv3d.1} parent=5 // pred_region
      %s886 = ssub.s32 %s9, 2
      // Predicated region
      $region49: #{basic_conv3d.1} parent=47 // pred_check
        %p887 = pneg %p135
      $region50: #{basic_conv3d.1} parent=47 // pred_check_branch
        %889 = sbr.rel (%p887) target = $region52
      $region51: #{basic_conv3d.1} parent=47 // pred_region
        %s890 = smul.u32 %s22, 4
        %s891 = sadd.s32 %s890, %s23
        %p892 = scmp.lt.s32.totalorder %s891, 7
        %s893 = scalar_select %p892, %s891, 7
        %s894 = smul.addr %s893, 8
        %s895 = smul.addr %s894, 8
        %s896 = scalar_lea.vmem %s3, %s895
      $region52: #{basic_conv3d.1} parent=47 // pred_fallthru
        _
    $region48: #{basic_conv3d.1} parent=5 // pred_fallthru
      _
  $region6: #{basic_conv3d.1} parent=0 // loop_footer
    %s13 = sadd.s32 1, %s9
  $region7: #{basic_conv3d.1} parent=0 // loop_footer_branch
    %8 = sbr.rel target = $region3
  $region8: #{basic_conv3d.1} parent=0 // loop_exit
    _

</llo_original>
